<compile_context>
chip_gen: v5e
topology: v5e:2x2
jax: 0.10.0
libtpu: 0.0.40
codegen_flags: <defaults>
</compile_context>

<pallas_src>
import functools
import math

import jax
import jax.numpy as jnp
from jax.experimental import pallas as pl
from jax.experimental.pallas import tpu as pltpu

LN_EPS = 1e-5


def _round_up(x, m):
    return (x + m - 1) // m * m


def _vmem_limit_bytes(default=64 * 1024 * 1024):
    # Derive the scoped-VMEM limit from the chip, leaving ~20% headroom for
    # Mosaic internal scratch and f32 intermediates (xn, q, scores, mem_out).
    try:
        cap = int(pltpu.get_tpu_info().vmem_capacity_bytes)
    except Exception:  # pragma: no cover - fall back to a safe v7x-sized value
        cap = default
    return max(32 * 1024 * 1024, int(cap * 0.8))


def _const_spec(shape):
    # Constant-index operand (same block every grid step): single-buffer it so
    # it doesn't pay the default 2x pipelining VMEM cost.
    index_map = lambda i: (0, 0)
    try:
        return pl.BlockSpec(shape, index_map, pipeline_mode=pl.Buffered(1))
    except Exception:  # older jax without pipeline_mode / Buffered
        return pl.BlockSpec(shape, index_map)


def _pick_row_tile(R, row_tile):
    # Sublane-aligned row tile. Prefer: (a) >= 2 grid steps (v7x has 2 TCs),
    # (b) a divisor of R so no jnp.pad HBM copy of x is needed.
    cap = min(row_tile, _round_up(R, 8))
    if R > 8:
        cap = min(cap, _round_up(pl.cdiv(R, 2), 8))
    cap = max(8, cap - cap % 8)
    if R % 8 == 0:
        for cand in range(cap, 7, -8):
            if R % cand == 0:
                return cand
    return cap


def _layernorm(x, gamma, beta, h_actual):
    # x: (N, H_pad) any float dtype; stats computed in f32 over the real H
    # columns only (padded lanes are excluded via masking).
    x = x.astype(jnp.float32)
    h_pad = x.shape[-1]
    if h_actual == h_pad:
        mean = jnp.mean(x, axis=-1, keepdims=True)
        diff = x - mean
        var = jnp.mean(diff * diff, axis=-1, keepdims=True)
    else:
        mask = jax.lax.broadcasted_iota(jnp.int32, x.shape, x.ndim - 1) < h_actual
        inv_h = 1.0 / h_actual
        mean = jnp.sum(jnp.where(mask, x, 0.0), axis=-1, keepdims=True) * inv_h
        diff = jnp.where(mask, x - mean, 0.0)
        var = jnp.sum(diff * diff, axis=-1, keepdims=True) * inv_h
    inv = jax.lax.rsqrt(var + LN_EPS)
    return diff * inv * gamma + beta


# ----------------------------------------------------------------------------
# Stage 1: batch-independent memory path (runs once; not in the hot loop).
# ----------------------------------------------------------------------------
def kv_kernel(mem_ref, g_ref, b_ref, wk_ref, bk_ref, wv_ref, bv_ref,
              kt_out_ref, v_out_ref, *, h_actual):
    mn = _layernorm(mem_ref[0], g_ref[...], b_ref[...], h_actual)  # (M, H) f32
    mn_b = mn.astype(jnp.bfloat16)
    k = jnp.dot(mn_b, wk_ref[...], preferred_element_type=jnp.float32) + bk_ref[...]
    v = jnp.dot(mn_b, wv_ref[...], preferred_element_type=jnp.float32) + bv_ref[...]
    # One-time XLU transpose here so the hot loop gets a canonical (H, M) K.
    kt_out_ref[...] = k.T.astype(kt_out_ref.dtype)
    v_out_ref[...] = v.astype(v_out_ref.dtype)


# ----------------------------------------------------------------------------
# Stage 2: fused (B*S) row tiles against resident K^T / V and weights.
# ----------------------------------------------------------------------------
def attn_kernel(x_ref, g_ref, b_ref, kt_ref, v_ref,
                wq_ref, bq_ref, wo_ref, bo_ref, out_ref, *, h_actual, m_actual):
    # Elementwise math in f32; MXU operands in bf16 with f32 accumulation.
    xn = _layernorm(x_ref[...], g_ref[...], b_ref[...], h_actual)      # (TS, Hp) f32

    # Wq/bq are pre-scaled by 1/sqrt(H) in the wrapper.
    q = jnp.dot(xn.astype(jnp.bfloat16), wq_ref[...],
                preferred_element_type=jnp.float32) + bq_ref[...]      # (TS, Hp)

    # scores = q @ K^T, with K stored pre-transposed (Hp, Mp): canonical dot.
    scores = jnp.dot(q.astype(jnp.bfloat16), kt_ref[...],
                     preferred_element_type=jnp.float32)               # (TS, Mp)

    if m_actual != scores.shape[-1]:
        # Mask padded memory-slot columns so they get exactly zero attention.
        col = jax.lax.broadcasted_iota(jnp.int32, scores.shape, 1)
        scores = jnp.where(col < m_actual, scores, -1e30)

    scores = scores - jnp.max(scores, axis=-1, keepdims=True)
    p = jnp.exp(scores)
    attn = p * pl.reciprocal(jnp.sum(p, axis=-1, keepdims=True), approx=True)

    mem_out = jnp.dot(attn.astype(jnp.bfloat16), v_ref[...],
                      preferred_element_type=jnp.float32)              # (TS, Hp)
    out = jnp.dot(mem_out.astype(jnp.bfloat16), wo_ref[...],
                  preferred_element_type=jnp.float32) + bo_ref[...]
    out_ref[...] = out.astype(out_ref.dtype)


def memory_bank_forward(x, params, *, row_tile=512):
    B, S, H = x.shape
    M = params["memory"].shape[1]
    scale = 1.0 / math.sqrt(H)

    # Pad H and M to multiples of 128 for lane-dense stores and MXU fill.
    H_pad = _round_up(H, 128)
    M_pad = _round_up(M, 128)
    dh = H_pad - H

    def pad_w(w):  # (H, H) -> (H_pad, H_pad), zero-padded
        return jnp.pad(w, ((0, dh), (0, dh)))

    def pad_b(b):  # (1, H) -> (1, H_pad), zero-padded
        return jnp.pad(b, ((0, 0), (0, dh)))

    # bf16 MXU operands; fold the 1/sqrt(H) score scale into the Q projection.
    wq = pad_w(params["wq"] * scale).astype(jnp.bfloat16)
    bq = pad_b(params["bq"] * scale).astype(jnp.float32)
    wk = pad_w(params["wk"]).astype(jnp.bfloat16)
    bk = pad_b(params["bk"]).astype(jnp.float32)
    wv = pad_w(params["wv"]).astype(jnp.bfloat16)
    bv = pad_b(params["bv"]).astype(jnp.float32)
    wo = pad_w(params["wo"]).astype(jnp.bfloat16)
    bo = pad_b(params["bo"]).astype(jnp.float32)
    in_g, in_b = pad_b(params["in_gamma"]), pad_b(params["in_beta"])
    mem_g, mem_b = pad_b(params["mem_gamma"]), pad_b(params["mem_beta"])
    memory = jnp.pad(params["memory"], ((0, 0), (0, M_pad - M), (0, dh)))

    vmem_limit = _vmem_limit_bytes()

    # --- Stage 1: compute K^T / V once (memory is batch-independent). ---
    kt, v = pl.pallas_call(
        functools.partial(kv_kernel, h_actual=H),
        out_shape=(jax.ShapeDtypeStruct((H_pad, M_pad), jnp.bfloat16),
                   jax.ShapeDtypeStruct((M_pad, H_pad), jnp.bfloat16)),
        compiler_params=pltpu.CompilerParams(vmem_limit_bytes=vmem_limit),
    )(memory, mem_g, mem_b, wk, bk, wv, bv)

    # --- Stage 2: grid over fused B*S row tiles. ---
    R = B * S
    ts = _pick_row_tile(R, row_tile)
    R_pad = _round_up(R, ts)
    # Stream x in bf16: halves the dominant per-tile HBM read traffic.
    x2 = x.reshape(R, H).astype(jnp.bfloat16)
    if R_pad != R or dh != 0:
        x2 = jnp.pad(x2, ((0, R_pad - R), (0, dh)))

    row_spec = pl.BlockSpec((ts, H_pad), lambda i: (i, 0))
    # NOTE: on v5e, if profiling shows exposed input DMA, the x row_spec can be
    # given pipeline_mode=pl.Buffered(3) for deeper prefetch.

    out2 = pl.pallas_call(
        functools.partial(attn_kernel, h_actual=H, m_actual=M),
        out_shape=jax.ShapeDtypeStruct((R_pad, H_pad), x.dtype),
        grid_spec=pltpu.PrefetchScalarGridSpec(
            num_scalar_prefetch=0,
            grid=(R_pad // ts,),
            in_specs=[
                row_spec,                                          # x rows (streamed)
                _const_spec((1, H_pad)), _const_spec((1, H_pad)),  # input_norm gamma/beta
                _const_spec((H_pad, M_pad)),                       # K^T (resident bf16)
                _const_spec((M_pad, H_pad)),                       # V   (resident bf16)
                _const_spec((H_pad, H_pad)), _const_spec((1, H_pad)),  # Wq (pre-scaled), bq
                _const_spec((H_pad, H_pad)), _const_spec((1, H_pad)),  # Wo, bo
            ],
            out_specs=row_spec,
        ),
        compiler_params=pltpu.CompilerParams(
            dimension_semantics=("parallel",),
            vmem_limit_bytes=vmem_limit,
        ),
    )(x2, in_g, in_b, kt, v, wq, bq, wo, bo)

    return out2[:R, :H].reshape(B, S, H)


def init_params(key, memory_size, hidden_size):
    ks = jax.random.split(key, 10)
    H = hidden_size
    bound = 1.0 / math.sqrt(H)  # torch.nn.Linear default init range

    def linear(kw, kb):
        # Stored pre-transposed: [in, out]
        w = jax.random.uniform(kw, (H, H), jnp.float32, -bound, bound)
        b = jax.random.uniform(kb, (1, H), jnp.float32, -bound, bound)
        return w, b

    wq, bq = linear(ks[0], ks[1])
    wk, bk = linear(ks[2], ks[3])
    wv, bv = linear(ks[4], ks[5])
    wo, bo = linear(ks[6], ks[7])
    memory = jax.random.normal(ks[8], (1, memory_size, H), jnp.float32)

    return dict(
        memory=memory,
        in_gamma=jnp.ones((1, H), jnp.float32), in_beta=jnp.zeros((1, H), jnp.float32),
        mem_gamma=jnp.ones((1, H), jnp.float32), mem_beta=jnp.zeros((1, H), jnp.float32),
        wq=wq, bq=bq, wk=wk, bk=bk, wv=wv, bv=bv, wo=wo, bo=bo,
    )


def reference_forward(x, params):
    # Pure-JAX f32 reference mirroring the PyTorch module.
    def ln(t, g, b):
        mu = jnp.mean(t, axis=-1, keepdims=True)
        var = jnp.mean((t - mu) ** 2, axis=-1, keepdims=True)
        return (t - mu) * jax.lax.rsqrt(var + LN_EPS) * g + b

    H = x.shape[-1]
    xn = ln(x, params["in_gamma"], params["in_beta"])
    mn = ln(params["memory"], params["mem_gamma"], params["mem_beta"])
    q = xn @ params["wq"] + params["bq"]
    k = mn @ params["wk"] + params["bk"]
    v = mn @ params["wv"] + params["bv"]
    scores = jnp.einsum("bsh,bmh->bsm", q,
                        jnp.broadcast_to(k, (x.shape[0],) + k.shape[1:]))
    scores = scores / math.sqrt(H)
    attn = jax.nn.softmax(scores, axis=-1)
    mem_out = jnp.einsum("bsm,bmh->bsh", attn,
                         jnp.broadcast_to(v, (x.shape[0],) + v.shape[1:]))
    return mem_out @ params["wo"] + params["bo"]


if __name__ == "__main__":
    # num_heads in the original module is unused by its forward(); omitted here.
    B, S, H, M = 2, 8, 32, 16
    key = jax.random.PRNGKey(0)
    kx, kp = jax.random.split(key)

    x = jax.random.normal(kx, (B, S, H), jnp.float32)
    params = init_params(kp, M, H)

    out = jax.block_until_ready(memory_bank_forward(x, params))
    ref = reference_forward(x, params)

    assert out.shape == (B, S, H)
    # bf16 streamed x + bf16 MXU operands + approx softmax reciprocal loosen
    # the tolerance relative to the pure-f32 reference.
    assert jnp.allclose(out, ref, atol=3e-2, rtol=3e-2), "mismatch vs reference"

    print("KERNEL_OK")
</pallas_src>

<mosaic_0001>
module attributes {stable_mosaic.version = 11 : i64} {
  func.func @kv_kernel(%arg0: memref<1x128x128xf32, #tpu.memory_space<vmem>>, %arg1: memref<1x128xf32, #tpu.memory_space<vmem>>, %arg2: memref<1x128xf32, #tpu.memory_space<vmem>>, %arg3: memref<128x128xbf16, #tpu.memory_space<vmem>>, %arg4: memref<1x128xf32, #tpu.memory_space<vmem>>, %arg5: memref<128x128xbf16, #tpu.memory_space<vmem>>, %arg6: memref<1x128xf32, #tpu.memory_space<vmem>>, %arg7: memref<128x128xbf16, #tpu.memory_space<vmem>>, %arg8: memref<128x128xbf16, #tpu.memory_space<vmem>>) attributes {dimension_semantics = [], scalar_prefetch = 0 : i64, scratch_operands = 0 : i64, tpu.core_type = #tpu.core_type<tc>} {
    %c0 = arith.constant 0 : index
    %c0_0 = arith.constant 0 : index
    %c0_1 = arith.constant 0 : index
    %0 = vector.load %arg0[%c0, %c0_0, %c0_1] : memref<1x128x128xf32, #tpu.memory_space<vmem>>, vector<1x128x128xf32>
    %1 = vector.shape_cast %0 : vector<1x128x128xf32> to vector<128x128xf32>
    %c0_2 = arith.constant 0 : index
    %c0_3 = arith.constant 0 : index
    %2 = vector.load %arg1[%c0_2, %c0_3] : memref<1x128xf32, #tpu.memory_space<vmem>>, vector<1x128xf32>
    %c0_4 = arith.constant 0 : index
    %c0_5 = arith.constant 0 : index
    %3 = vector.load %arg2[%c0_4, %c0_5] : memref<1x128xf32, #tpu.memory_space<vmem>>, vector<1x128xf32>
    %4 = tpu.iota {dimensions = array<i32: 1>} : vector<128x128xi32>
    %c32_i32 = arith.constant 32 : i32
    %5 = vector.broadcast %c32_i32 : i32 to vector<128x128xi32>
    %6 = arith.cmpi slt, %4, %5 : vector<128x128xi32>
    %cst = arith.constant 0.000000e+00 : f32
    %7 = vector.broadcast %cst : f32 to vector<128x128xf32>
    %8 = arith.select %6, %1, %7 : vector<128x128xi1>, vector<128x128xf32>
    %cst_6 = arith.constant dense<0.000000e+00> : vector<128xf32>
    %9 = vector.multi_reduction <add>, %8, %cst_6 [1] : vector<128x128xf32> to vector<128xf32>
    %10 = vector.shape_cast %9 : vector<128xf32> to vector<128x1xf32>
    %cst_7 = arith.constant 3.125000e-02 : f32
    %11 = vector.broadcast %cst_7 : f32 to vector<128x1xf32>
    %12 = arith.mulf %10, %11 : vector<128x1xf32>
    %13 = vector.broadcast %12 : vector<128x1xf32> to vector<128x128xf32>
    %14 = arith.subf %1, %13 : vector<128x128xf32>
    %cst_8 = arith.constant 0.000000e+00 : f32
    %15 = vector.broadcast %cst_8 : f32 to vector<128x128xf32>
    %16 = arith.select %6, %14, %15 : vector<128x128xi1>, vector<128x128xf32>
    %17 = arith.mulf %16, %16 : vector<128x128xf32>
    %cst_9 = arith.constant dense<0.000000e+00> : vector<128xf32>
    %18 = vector.multi_reduction <add>, %17, %cst_9 [1] : vector<128x128xf32> to vector<128xf32>
    %19 = vector.shape_cast %18 : vector<128xf32> to vector<128x1xf32>
    %cst_10 = arith.constant 3.125000e-02 : f32
    %20 = vector.broadcast %cst_10 : f32 to vector<128x1xf32>
    %21 = arith.mulf %19, %20 : vector<128x1xf32>
    %cst_11 = arith.constant 9.99999974E-6 : f32
    %22 = vector.broadcast %cst_11 : f32 to vector<128x1xf32>
    %23 = arith.addf %21, %22 : vector<128x1xf32>
    %24 = math.rsqrt %23 : vector<128x1xf32>
    %25 = vector.broadcast %24 : vector<128x1xf32> to vector<128x128xf32>
    %26 = arith.mulf %16, %25 : vector<128x128xf32>
    %27 = vector.broadcast %2 : vector<1x128xf32> to vector<128x128xf32>
    %28 = arith.mulf %26, %27 : vector<128x128xf32>
    %29 = vector.broadcast %3 : vector<1x128xf32> to vector<128x128xf32>
    %30 = arith.addf %28, %29 : vector<128x128xf32>
    %31 = arith.truncf %30 : vector<128x128xf32> to vector<128x128xbf16>
    %c0_12 = arith.constant 0 : index
    %c0_13 = arith.constant 0 : index
    %32 = vector.load %arg3[%c0_12, %c0_13] : memref<128x128xbf16, #tpu.memory_space<vmem>>, vector<128x128xbf16>
    %cst_14 = arith.constant dense<0.000000e+00> : vector<128x128xf32>
    %33 = tpu.matmul %31, %32, %cst_14 {dimension_numbers = #tpu.dot_dimension_numbers<[1], [0], [0], [1], [0, 0, 1, 1], [], []>} : vector<128x128xbf16>, vector<128x128xbf16>, vector<128x128xf32> -> vector<128x128xf32>
    %c0_15 = arith.constant 0 : index
    %c0_16 = arith.constant 0 : index
    %34 = vector.load %arg4[%c0_15, %c0_16] : memref<1x128xf32, #tpu.memory_space<vmem>>, vector<1x128xf32>
    %35 = vector.broadcast %34 : vector<1x128xf32> to vector<128x128xf32>
    %36 = arith.addf %33, %35 : vector<128x128xf32>
    %c0_17 = arith.constant 0 : index
    %c0_18 = arith.constant 0 : index
    %37 = vector.load %arg5[%c0_17, %c0_18] : memref<128x128xbf16, #tpu.memory_space<vmem>>, vector<128x128xbf16>
    %cst_19 = arith.constant dense<0.000000e+00> : vector<128x128xf32>
    %38 = tpu.matmul %31, %37, %cst_19 {dimension_numbers = #tpu.dot_dimension_numbers<[1], [0], [0], [1], [0, 0, 1, 1], [], []>} : vector<128x128xbf16>, vector<128x128xbf16>, vector<128x128xf32> -> vector<128x128xf32>
    %c0_20 = arith.constant 0 : index
    %c0_21 = arith.constant 0 : index
    %39 = vector.load %arg6[%c0_20, %c0_21] : memref<1x128xf32, #tpu.memory_space<vmem>>, vector<1x128xf32>
    %40 = vector.broadcast %39 : vector<1x128xf32> to vector<128x128xf32>
    %41 = arith.addf %38, %40 : vector<128x128xf32>
    %42 = tpu.transpose %36, [1, 0] : vector<128x128xf32> -> vector<128x128xf32>
    %43 = arith.truncf %42 : vector<128x128xf32> to vector<128x128xbf16>
    %c0_22 = arith.constant 0 : index
    %c0_23 = arith.constant 0 : index
    %44 = vector.load %arg7[%c0_22, %c0_23] : memref<128x128xbf16, #tpu.memory_space<vmem>>, vector<128x128xbf16>
    tpu.vector_store %arg7[%c0_22, %c0_23], %43 {strides = array<i32>} : memref<128x128xbf16, #tpu.memory_space<vmem>>, vector<128x128xbf16>,
    %45 = arith.truncf %41 : vector<128x128xf32> to vector<128x128xbf16>
    %c0_24 = arith.constant 0 : index
    %c0_25 = arith.constant 0 : index
    %46 = vector.load %arg8[%c0_24, %c0_25] : memref<128x128xbf16, #tpu.memory_space<vmem>>, vector<128x128xbf16>
    tpu.vector_store %arg8[%c0_24, %c0_25], %45 {strides = array<i32>} : memref<128x128xbf16, #tpu.memory_space<vmem>>, vector<128x128xbf16>,
    return
  }
}

</mosaic_0001>

<llo_original>
// kernel: tpu_custom_call.1
$region0: #{tpu_custom_call.1}
  #allocation0 [shape = 'u32[]', space=smem, size = 0x4, offset = 0x4, fixed_abs, tag = 'smem constant byte address 0x4 - core index']
  #allocation1 [shape = 'u32[72,128]{1,0:T(1,128)}', space=vmem, size = 0x9000, scoped, tag = 'internal scratch']
  %s0 = inlined_call_operand.hbm [shape: f32[1,128,128], index: 0, kind: input, shape index: {}]
  %s1 = inlined_call_operand.hbm [shape: f32[1,128], index: 1, kind: input, shape index: {}]
  %s2 = inlined_call_operand.vmem [shape: f32[1,128], index: 2, kind: input, shape index: {}]
  %s3 = inlined_call_operand.hbm [shape: bf16[128,128], index: 3, kind: input, shape index: {}]
  %s4 = inlined_call_operand.vmem [shape: f32[1,128], index: 4, kind: input, shape index: {}]
  %s5 = inlined_call_operand.hbm [shape: bf16[128,128], index: 5, kind: input, shape index: {}]
  %s6 = inlined_call_operand.vmem [shape: f32[1,128], index: 6, kind: input, shape index: {}]
  %s7 = inlined_call_operand.hbm [shape: bf16[128,128], index: 7, kind: output, shape index: {0}]
  %s8 = inlined_call_operand.hbm [shape: bf16[128,128], index: 8, kind: output, shape index: {1}]
  %9 = xla_tuple %s7, %s8
  %s10 = sld [smem:[#allocation0]]
  $region62: #{tpu_custom_call.1} parent=0
    _
  %s12 = ssub.s32 1, %s10
  %s13 = scalar_select 0, %s12, %s10
  $region1: #{tpu_custom_call.1} parent=0
    #allocation2 [shape = 'u8[65536]{0}', space=vmem, size = 0x10000, scoped, tag = 'input window, operand 0, single buffered']
    #allocation3 [shape = 's32[1]{0}', space=sflag, size = 0x4, scoped, tag = 'scoped memory for tpu_custom_call.1']
    #allocation4 [shape = 's32[1]{0}', space=sflag, size = 0x4, scoped, tag = 'scoped memory for tpu_custom_call.1']
    #allocation5 [shape = 'u8[512]{0}', space=vmem, size = 0x400, scoped, tag = 'input window, operand 1, single buffered']
    #allocation6 [shape = 's32[1]{0}', space=sflag, size = 0x4, scoped, tag = 'scoped memory for tpu_custom_call.1']
    #allocation7 [shape = 'u8[32768]{0}', space=vmem, size = 0x8000, scoped, tag = 'input window, operand 3, single buffered']
    #allocation8 [shape = 'u8[32768]{0}', space=vmem, size = 0x8000, scoped, tag = 'input window, operand 5, single buffered']
    #allocation9 [shape = 's32[1]{0}', space=sflag, size = 0x4, scoped, tag = 'scoped memory for tpu_custom_call.1']
    #allocation10 [shape = 'u8[32768]{0}', space=vmem, size = 0x8000, scoped, tag = 'output window, operand 0, single buffered']
    #allocation11 [shape = 'u8[32768]{0}', space=vmem, size = 0x8000, scoped, tag = 'output window, operand 1, single buffered']
    #allocation12 [shape = 's32[1]{0}', space=sflag, size = 0x4, scoped, tag = 'scoped memory for tpu_custom_call.1']
    %14 = vsyncpa [#allocation3], 0
    %15 = vsyncpa [#allocation6], 0
    %16 = vsyncpa [#allocation9], 0
    %17 = vsyncpa [#allocation4], 0
    %18 = vsyncpa [#allocation12], 0
    // Predicated region
    $region2: #{tpu_custom_call.1} parent=1 // pred_check
      _
    $region3: #{tpu_custom_call.1} parent=1 // pred_check_branch
      %20 = sbr.rel (0) target = $region5
    $region4: #{tpu_custom_call.1} parent=1 // pred_region
      %22 = vsyncadd [#allocation3], 0
      %s23 = sshll.u32 %s0, 4
      %s24 = int_to_ptr.hbm [resolvable:$true] %s23
      %s25 = sshll.u32 [#allocation2], 4
      %s26 = int_to_ptr.vmem [resolvable:$true] %s25
      %31 = dma.hbm_to_vmem [thread:$0]  %s24, 2048, %s26, [#allocation3], 128, 128, 8
    $region5: #{tpu_custom_call.1} parent=1 // pred_fallthru
      _
    // Predicated region
    $region6: #{tpu_custom_call.1} parent=1 // pred_check
      _
    $region7: #{tpu_custom_call.1} parent=1 // pred_check_branch
      %33 = sbr.rel (0) target = $region9
    $region8: #{tpu_custom_call.1} parent=1 // pred_region
      %35 = vsyncadd [#allocation6], 0
      %s37 = sshll.u32 %s1, 4
      %s38 = int_to_ptr.hbm [resolvable:$true] %s37
      %s39 = sshll.u32 [#allocation5], 4
      %s40 = int_to_ptr.vmem [resolvable:$true] %s39
      %42 = dma.hbm_to_vmem [thread:$0]  %s38, 16, %s40, [#allocation6]
    $region9: #{tpu_custom_call.1} parent=1 // pred_fallthru
      _
    // Predicated region
    $region10: #{tpu_custom_call.1} parent=1 // pred_check
      _
    $region11: #{tpu_custom_call.1} parent=1 // pred_check_branch
      %44 = sbr.rel (0) target = $region13
    $region12: #{tpu_custom_call.1} parent=1 // pred_region
      _
    $region13: #{tpu_custom_call.1} parent=1 // pred_fallthru
      _
    // Predicated region
    $region14: #{tpu_custom_call.1} parent=1 // pred_check
      _
    $region15: #{tpu_custom_call.1} parent=1 // pred_check_branch
      %46 = sbr.rel (0) target = $region17
    $region16: #{tpu_custom_call.1} parent=1 // pred_region
      %48 = vsyncadd [#allocation6], 0
      %s49 = sshll.u32 %s3, 4
      %s50 = int_to_ptr.hbm [resolvable:$true] %s49
      %s51 = sshll.u32 [#allocation7], 4
      %s52 = int_to_ptr.vmem [resolvable:$true] %s51
      %57 = dma.hbm_to_vmem [thread:$0]  %s50, 1024, %s52, [#allocation6], 64, 64, 4
    $region17: #{tpu_custom_call.1} parent=1 // pred_fallthru
      _
    // Predicated region
    $region18: #{tpu_custom_call.1} parent=1 // pred_check
      _
    $region19: #{tpu_custom_call.1} parent=1 // pred_check_branch
      %59 = sbr.rel (0) target = $region21
    $region20: #{tpu_custom_call.1} parent=1 // pred_region
      _
    $region21: #{tpu_custom_call.1} parent=1 // pred_fallthru
      _
    // Predicated region
    $region22: #{tpu_custom_call.1} parent=1 // pred_check
      _
    $region23: #{tpu_custom_call.1} parent=1 // pred_check_branch
      %61 = sbr.rel (0) target = $region25
    $region24: #{tpu_custom_call.1} parent=1 // pred_region
      %63 = vsyncadd [#allocation9], 0
      %s64 = sshll.u32 %s5, 4
      %s65 = int_to_ptr.hbm [resolvable:$true] %s64
      %s66 = sshll.u32 [#allocation8], 4
      %s67 = int_to_ptr.vmem [resolvable:$true] %s66
      %72 = dma.hbm_to_vmem [thread:$0]  %s65, 1024, %s67, [#allocation9], 64, 64, 4
    $region25: #{tpu_custom_call.1} parent=1 // pred_fallthru
      _
    // Predicated region
    $region26: #{tpu_custom_call.1} parent=1 // pred_check
      _
    $region27: #{tpu_custom_call.1} parent=1 // pred_check_branch
      %74 = sbr.rel (0) target = $region29
    $region28: #{tpu_custom_call.1} parent=1 // pred_region
      _
    $region29: #{tpu_custom_call.1} parent=1 // pred_fallthru
      _
    // Predicated region
    $region30: #{tpu_custom_call.1} parent=1 // pred_check
      _
    $region31: #{tpu_custom_call.1} parent=1 // pred_check_branch
      %76 = sbr.rel (0) target = $region33
    $region32: #{tpu_custom_call.1} parent=1 // pred_region
      %78 = dma.done [#allocation3], 2048
    $region33: #{tpu_custom_call.1} parent=1 // pred_fallthru
      _
    // Predicated region
    $region34: #{tpu_custom_call.1} parent=1 // pred_check
      _
    $region35: #{tpu_custom_call.1} parent=1 // pred_check_branch
      %80 = sbr.rel (0) target = $region37
    $region36: #{tpu_custom_call.1} parent=1 // pred_region
      %82 = dma.done [#allocation6], 16
    $region37: #{tpu_custom_call.1} parent=1 // pred_fallthru
      _
    // Predicated region
    $region38: #{tpu_custom_call.1} parent=1 // pred_check
      _
    $region39: #{tpu_custom_call.1} parent=1 // pred_check_branch
      %84 = sbr.rel (0) target = $region41
    $region40: #{tpu_custom_call.1} parent=1 // pred_region
      %86 = dma.done [#allocation6], 1024
    $region41: #{tpu_custom_call.1} parent=1 // pred_fallthru
      _
    // Predicated region
    $region42: #{tpu_custom_call.1} parent=1 // pred_check
      _
    $region43: #{tpu_custom_call.1} parent=1 // pred_check_branch
      %88 = sbr.rel (0) target = $region45
    $region44: #{tpu_custom_call.1} parent=1 // pred_region
      %90 = dma.done [#allocation9], 1024
    $region45: #{tpu_custom_call.1} parent=1 // pred_fallthru
      _
    %v91 = vld [vmem:[#allocation2] sm:$0xff]
    %v92 = vld [vmem:[#allocation2 + $0x8] sm:$0xff]
    %v93 = vld [vmem:[#allocation2 + $0x10] sm:$0xff]
    %v94 = vld [vmem:[#allocation2 + $0x18] sm:$0xff]
    %v95 = vld [vmem:[#allocation2 + $0x20] sm:$0xff]
    %v96 = vld [vmem:[#allocation2 + $0x28] sm:$0xff]
    %v97 = vld [vmem:[#allocation2 + $0x30] sm:$0xff]
    %v98 = vld [vmem:[#allocation2 + $0x38] sm:$0xff]
    %v99 = vld [vmem:[#allocation2 + $0x40] sm:$0xff]
    %v100 = vld [vmem:[#allocation2 + $0x48] sm:$0xff]
    %v101 = vld [vmem:[#allocation2 + $0x50] sm:$0xff]
    %v102 = vld [vmem:[#allocation2 + $0x58] sm:$0xff]
    %v103 = vld [vmem:[#allocation2 + $0x60] sm:$0xff]
    %v104 = vld [vmem:[#allocation2 + $0x68] sm:$0xff]
    %v105 = vld [vmem:[#allocation2 + $0x70] sm:$0xff]
    %v106 = vld [vmem:[#allocation2 + $0x78] sm:$0xff]
    %v107 = vld [vmem:[#allocation5] sm:$0x1]
    %v108 = vld [vmem:[%s2] sm:$0x1]
    %v109 = vlaneseq
    %v110 = vand.u32 %v109, 127
    %vm111 = vcmp.lt.s32.totalorder %v110, 32
    %v112 = vsel %vm111, %v91, 0.0
    %v113 = vsel %vm111, %v92, 0.0
    %v114 = vsel %vm111, %v93, 0.0
    %v115 = vsel %vm111, %v94, 0.0
    %v116 = vsel %vm111, %v95, 0.0
    %v117 = vsel %vm111, %v96, 0.0
    %v118 = vsel %vm111, %v97, 0.0
    %v119 = vsel %vm111, %v98, 0.0
    %v120 = vsel %vm111, %v99, 0.0
    %v121 = vsel %vm111, %v100, 0.0
    %v122 = vsel %vm111, %v101, 0.0
    %v123 = vsel %vm111, %v102, 0.0
    %v124 = vsel %vm111, %v103, 0.0
    %v125 = vsel %vm111, %v104, 0.0
    %v126 = vsel %vm111, %v105, 0.0
    %v127 = vsel %vm111, %v106, 0.0
    %128 = vadd.xlane.f32.xlu0 %v112
    %v129 = vpop.xlane.xlu0 %128
    %130 = vadd.xlane.f32.xlu0 %v113
    %v131 = vpop.xlane.xlu0 %130
    %132 = vadd.xlane.f32.xlu0 %v114
    %v133 = vpop.xlane.xlu0 %132
    %134 = vadd.xlane.f32.xlu0 %v115
    %v135 = vpop.xlane.xlu0 %134
    %136 = vadd.xlane.f32.xlu0 %v116
    %v137 = vpop.xlane.xlu0 %136
    %138 = vadd.xlane.f32.xlu0 %v117
    %v139 = vpop.xlane.xlu0 %138
    %140 = vadd.xlane.f32.xlu0 %v118
    %v141 = vpop.xlane.xlu0 %140
    %142 = vadd.xlane.f32.xlu0 %v119
    %v143 = vpop.xlane.xlu0 %142
    %144 = vadd.xlane.f32.xlu0 %v120
    %v145 = vpop.xlane.xlu0 %144
    %146 = vadd.xlane.f32.xlu0 %v121
    %v147 = vpop.xlane.xlu0 %146
    %148 = vadd.xlane.f32.xlu0 %v122
    %v149 = vpop.xlane.xlu0 %148
    %150 = vadd.xlane.f32.xlu0 %v123
    %v151 = vpop.xlane.xlu0 %150
    %152 = vadd.xlane.f32.xlu0 %v124
    %v153 = vpop.xlane.xlu0 %152
    %154 = vadd.xlane.f32.xlu0 %v125
    %v155 = vpop.xlane.xlu0 %154
    %156 = vadd.xlane.f32.xlu0 %v126
    %v157 = vpop.xlane.xlu0 %156
    %158 = vadd.xlane.f32.xlu0 %v127
    %v159 = vpop.xlane.xlu0 %158
    %v160 = vmul.f32 %v129, 0.03125
    %v161 = vmul.f32 %v131, 0.03125
    %v162 = vmul.f32 %v133, 0.03125
    %v163 = vmul.f32 %v135, 0.03125
    %v164 = vmul.f32 %v137, 0.03125
    %v165 = vmul.f32 %v139, 0.03125
    %v166 = vmul.f32 %v141, 0.03125
    %v167 = vmul.f32 %v143, 0.03125
    %v168 = vmul.f32 %v145, 0.03125
    %v169 = vmul.f32 %v147, 0.03125
    %v170 = vmul.f32 %v149, 0.03125
    %v171 = vmul.f32 %v151, 0.03125
    %v172 = vmul.f32 %v153, 0.03125
    %v173 = vmul.f32 %v155, 0.03125
    %v174 = vmul.f32 %v157, 0.03125
    %v175 = vmul.f32 %v159, 0.03125
    %v176 = vsub.f32 %v91, %v160
    %v177 = vsub.f32 %v92, %v161
    %v178 = vsub.f32 %v93, %v162
    %v179 = vsub.f32 %v94, %v163
    %v180 = vsub.f32 %v95, %v164
    %v181 = vsub.f32 %v96, %v165
    %v182 = vsub.f32 %v97, %v166
    %v183 = vsub.f32 %v98, %v167
    %v184 = vsub.f32 %v99, %v168
    %v185 = vsub.f32 %v100, %v169
    %v186 = vsub.f32 %v101, %v170
    %v187 = vsub.f32 %v102, %v171
    %v188 = vsub.f32 %v103, %v172
    %v189 = vsub.f32 %v104, %v173
    %v190 = vsub.f32 %v105, %v174
    %v191 = vsub.f32 %v106, %v175
    %v192 = vsel %vm111, %v176, 0.0
    %v193 = vsel %vm111, %v177, 0.0
    %v194 = vsel %vm111, %v178, 0.0
    %v195 = vsel %vm111, %v179, 0.0
    %v196 = vsel %vm111, %v180, 0.0
    %v197 = vsel %vm111, %v181, 0.0
    %v198 = vsel %vm111, %v182, 0.0
    %v199 = vsel %vm111, %v183, 0.0
    %v200 = vsel %vm111, %v184, 0.0
    %v201 = vsel %vm111, %v185, 0.0
    %v202 = vsel %vm111, %v186, 0.0
    %v203 = vsel %vm111, %v187, 0.0
    %v204 = vsel %vm111, %v188, 0.0
    %v205 = vsel %vm111, %v189, 0.0
    %v206 = vsel %vm111, %v190, 0.0
    %v207 = vsel %vm111, %v191, 0.0
    %v208 = vmul.f32 %v192, %v192
    %v209 = vmul.f32 %v193, %v193
    %v210 = vmul.f32 %v194, %v194
    %v211 = vmul.f32 %v195, %v195
    %v212 = vmul.f32 %v196, %v196
    %v213 = vmul.f32 %v197, %v197
    %v214 = vmul.f32 %v198, %v198
    %v215 = vmul.f32 %v199, %v199
    %v216 = vmul.f32 %v200, %v200
    %v217 = vmul.f32 %v201, %v201
    %v218 = vmul.f32 %v202, %v202
    %v219 = vmul.f32 %v203, %v203
    %v220 = vmul.f32 %v204, %v204
    %v221 = vmul.f32 %v205, %v205
    %v222 = vmul.f32 %v206, %v206
    %v223 = vmul.f32 %v207, %v207
    %224 = vadd.xlane.f32.xlu0 %v208
    %v225 = vpop.xlane.xlu0 %224
    %226 = vadd.xlane.f32.xlu0 %v209
    %v227 = vpop.xlane.xlu0 %226
    %228 = vadd.xlane.f32.xlu0 %v210
    %v229 = vpop.xlane.xlu0 %228
    %230 = vadd.xlane.f32.xlu0 %v211
    %v231 = vpop.xlane.xlu0 %230
    %232 = vadd.xlane.f32.xlu0 %v212
    %v233 = vpop.xlane.xlu0 %232
    %234 = vadd.xlane.f32.xlu0 %v213
    %v235 = vpop.xlane.xlu0 %234
    %236 = vadd.xlane.f32.xlu0 %v214
    %v237 = vpop.xlane.xlu0 %236
    %238 = vadd.xlane.f32.xlu0 %v215
    %v239 = vpop.xlane.xlu0 %238
    %240 = vadd.xlane.f32.xlu0 %v216
    %v241 = vpop.xlane.xlu0 %240
    %242 = vadd.xlane.f32.xlu0 %v217
    %v243 = vpop.xlane.xlu0 %242
    %244 = vadd.xlane.f32.xlu0 %v218
    %v245 = vpop.xlane.xlu0 %244
    %246 = vadd.xlane.f32.xlu0 %v219
    %v247 = vpop.xlane.xlu0 %246
    %248 = vadd.xlane.f32.xlu0 %v220
    %v249 = vpop.xlane.xlu0 %248
    %250 = vadd.xlane.f32.xlu0 %v221
    %v251 = vpop.xlane.xlu0 %250
    %252 = vadd.xlane.f32.xlu0 %v222
    %v253 = vpop.xlane.xlu0 %252
    %254 = vadd.xlane.f32.xlu0 %v223
    %v255 = vpop.xlane.xlu0 %254
    %v256 = vmul.f32 %v225, 0.03125
    %v257 = vmul.f32 %v227, 0.03125
    %v258 = vmul.f32 %v229, 0.03125
    %v259 = vmul.f32 %v231, 0.03125
    %v260 = vmul.f32 %v233, 0.03125
    %v261 = vmul.f32 %v235, 0.03125
    %v262 = vmul.f32 %v237, 0.03125
    %v263 = vmul.f32 %v239, 0.03125
    %v264 = vmul.f32 %v241, 0.03125
    %v265 = vmul.f32 %v243, 0.03125
    %v266 = vmul.f32 %v245, 0.03125
    %v267 = vmul.f32 %v247, 0.03125
    %v268 = vmul.f32 %v249, 0.03125
    %v269 = vmul.f32 %v251, 0.03125
    %v270 = vmul.f32 %v253, 0.03125
    %v271 = vmul.f32 %v255, 0.03125
    %v272 = vadd.f32 %v256, 1e-05
    %v273 = vadd.f32 %v257, 1e-05
    %v274 = vadd.f32 %v258, 1e-05
    %v275 = vadd.f32 %v259, 1e-05
    %v276 = vadd.f32 %v260, 1e-05
    %v277 = vadd.f32 %v261, 1e-05
    %v278 = vadd.f32 %v262, 1e-05
    %v279 = vadd.f32 %v263, 1e-05
    %v280 = vadd.f32 %v264, 1e-05
    %v281 = vadd.f32 %v265, 1e-05
    %v282 = vadd.f32 %v266, 1e-05
    %v283 = vadd.f32 %v267, 1e-05
    %v284 = vadd.f32 %v268, 1e-05
    %v285 = vadd.f32 %v269, 1e-05
    %v286 = vadd.f32 %v270, 1e-05
    %v287 = vadd.f32 %v271, 1e-05
    %v288 = vrsqrt.pop %v272
    %v289 = vmul.f32 %v288, %v272
    %v290 = vmul.f32 %v289, %v288
    %v291 = vmul.f32 0.5, %v290
    %v292 = vsub.f32 1.5, %v291
    %v293 = vmul.f32 %v288, %v292
    %vm294 = vweird.f32 %v272
    %vm295 = vweird.f32 %v288
    %vm296 = vmor %vm294, %vm295
    %v297 = vsel %vm296, %v288, %v293
    %v298 = vrsqrt.pop %v273
    %v299 = vmul.f32 %v298, %v273
    %v300 = vmul.f32 %v299, %v298
    %v301 = vmul.f32 0.5, %v300
    %v302 = vsub.f32 1.5, %v301
    %v303 = vmul.f32 %v298, %v302
    %vm304 = vweird.f32 %v273
    %vm305 = vweird.f32 %v298
    %vm306 = vmor %vm304, %vm305
    %v307 = vsel %vm306, %v298, %v303
    %v308 = vrsqrt.pop %v274
    %v309 = vmul.f32 %v308, %v274
    %v310 = vmul.f32 %v309, %v308
    %v311 = vmul.f32 0.5, %v310
    %v312 = vsub.f32 1.5, %v311
    %v313 = vmul.f32 %v308, %v312
    %vm314 = vweird.f32 %v274
    %vm315 = vweird.f32 %v308
    %vm316 = vmor %vm314, %vm315
    %v317 = vsel %vm316, %v308, %v313
    %v318 = vrsqrt.pop %v275
    %v319 = vmul.f32 %v318, %v275
    %v320 = vmul.f32 %v319, %v318
    %v321 = vmul.f32 0.5, %v320
    %v322 = vsub.f32 1.5, %v321
    %v323 = vmul.f32 %v318, %v322
    %vm324 = vweird.f32 %v275
    %vm325 = vweird.f32 %v318
    %vm326 = vmor %vm324, %vm325
    %v327 = vsel %vm326, %v318, %v323
    %v328 = vrsqrt.pop %v276
    %v329 = vmul.f32 %v328, %v276
    %v330 = vmul.f32 %v329, %v328
    %v331 = vmul.f32 0.5, %v330
    %v332 = vsub.f32 1.5, %v331
    %v333 = vmul.f32 %v328, %v332
    %vm334 = vweird.f32 %v276
    %vm335 = vweird.f32 %v328
    %vm336 = vmor %vm334, %vm335
    %v337 = vsel %vm336, %v328, %v333
    %v338 = vrsqrt.pop %v277
    %v339 = vmul.f32 %v338, %v277
    %v340 = vmul.f32 %v339, %v338
    %v341 = vmul.f32 0.5, %v340
    %v342 = vsub.f32 1.5, %v341
    %v343 = vmul.f32 %v338, %v342
    %vm344 = vweird.f32 %v277
    %vm345 = vweird.f32 %v338
    %vm346 = vmor %vm344, %vm345
    %v347 = vsel %vm346, %v338, %v343
    %v348 = vrsqrt.pop %v278
    %v349 = vmul.f32 %v348, %v278
    %v350 = vmul.f32 %v349, %v348
    %v351 = vmul.f32 0.5, %v350
    %v352 = vsub.f32 1.5, %v351
    %v353 = vmul.f32 %v348, %v352
    %vm354 = vweird.f32 %v278
    %vm355 = vweird.f32 %v348
    %vm356 = vmor %vm354, %vm355
    %v357 = vsel %vm356, %v348, %v353
    %v358 = vrsqrt.pop %v279
    %v359 = vmul.f32 %v358, %v279
    %v360 = vmul.f32 %v359, %v358
    %v361 = vmul.f32 0.5, %v360
    %v362 = vsub.f32 1.5, %v361
    %v363 = vmul.f32 %v358, %v362
    %vm364 = vweird.f32 %v279
    %vm365 = vweird.f32 %v358
    %vm366 = vmor %vm364, %vm365
    %v367 = vsel %vm366, %v358, %v363
    %v368 = vrsqrt.pop %v280
    %v369 = vmul.f32 %v368, %v280
    %v370 = vmul.f32 %v369, %v368
    %v371 = vmul.f32 0.5, %v370
    %v372 = vsub.f32 1.5, %v371
    %v373 = vmul.f32 %v368, %v372
    %vm374 = vweird.f32 %v280
    %vm375 = vweird.f32 %v368
    %vm376 = vmor %vm374, %vm375
    %v377 = vsel %vm376, %v368, %v373
    %v378 = vrsqrt.pop %v281
    %v379 = vmul.f32 %v378, %v281
    %v380 = vmul.f32 %v379, %v378
    %v381 = vmul.f32 0.5, %v380
    %v382 = vsub.f32 1.5, %v381
    %v383 = vmul.f32 %v378, %v382
    %vm384 = vweird.f32 %v281
    %vm385 = vweird.f32 %v378
    %vm386 = vmor %vm384, %vm385
    %v387 = vsel %vm386, %v378, %v383
    %v388 = vrsqrt.pop %v282
    %v389 = vmul.f32 %v388, %v282
    %v390 = vmul.f32 %v389, %v388
    %v391 = vmul.f32 0.5, %v390
    %v392 = vsub.f32 1.5, %v391
    %v393 = vmul.f32 %v388, %v392
    %vm394 = vweird.f32 %v282
    %vm395 = vweird.f32 %v388
    %vm396 = vmor %vm394, %vm395
    %v397 = vsel %vm396, %v388, %v393
    %v398 = vrsqrt.pop %v283
    %v399 = vmul.f32 %v398, %v283
    %v400 = vmul.f32 %v399, %v398
    %v401 = vmul.f32 0.5, %v400
    %v402 = vsub.f32 1.5, %v401
    %v403 = vmul.f32 %v398, %v402
    %vm404 = vweird.f32 %v283
    %vm405 = vweird.f32 %v398
    %vm406 = vmor %vm404, %vm405
    %v407 = vsel %vm406, %v398, %v403
    %v408 = vrsqrt.pop %v284
    %v409 = vmul.f32 %v408, %v284
    %v410 = vmul.f32 %v409, %v408
    %v411 = vmul.f32 0.5, %v410
    %v412 = vsub.f32 1.5, %v411
    %v413 = vmul.f32 %v408, %v412
    %vm414 = vweird.f32 %v284
    %vm415 = vweird.f32 %v408
    %vm416 = vmor %vm414, %vm415
    %v417 = vsel %vm416, %v408, %v413
    %v418 = vrsqrt.pop %v285
    %v419 = vmul.f32 %v418, %v285
    %v420 = vmul.f32 %v419, %v418
    %v421 = vmul.f32 0.5, %v420
    %v422 = vsub.f32 1.5, %v421
    %v423 = vmul.f32 %v418, %v422
    %vm424 = vweird.f32 %v285
    %vm425 = vweird.f32 %v418
    %vm426 = vmor %vm424, %vm425
    %v427 = vsel %vm426, %v418, %v423
    %v428 = vrsqrt.pop %v286
    %v429 = vmul.f32 %v428, %v286
    %v430 = vmul.f32 %v429, %v428
    %v431 = vmul.f32 0.5, %v430
    %v432 = vsub.f32 1.5, %v431
    %v433 = vmul.f32 %v428, %v432
    %vm434 = vweird.f32 %v286
    %vm435 = vweird.f32 %v428
    %vm436 = vmor %vm434, %vm435
    %v437 = vsel %vm436, %v428, %v433
    %v438 = vrsqrt.pop %v287
    %v439 = vmul.f32 %v438, %v287
    %v440 = vmul.f32 %v439, %v438
    %v441 = vmul.f32 0.5, %v440
    %v442 = vsub.f32 1.5, %v441
    %v443 = vmul.f32 %v438, %v442
    %vm444 = vweird.f32 %v287
    %vm445 = vweird.f32 %v438
    %vm446 = vmor %vm444, %vm445
    %v447 = vsel %vm446, %v438, %v443
    %v448 = vmul.f32 %v192, %v297
    %v449 = vmul.f32 %v193, %v307
    %v450 = vmul.f32 %v194, %v317
    %v451 = vmul.f32 %v195, %v327
    %v452 = vmul.f32 %v196, %v337
    %v453 = vmul.f32 %v197, %v347
    %v454 = vmul.f32 %v198, %v357
    %v455 = vmul.f32 %v199, %v367
    %v456 = vmul.f32 %v200, %v377
    %v457 = vmul.f32 %v201, %v387
    %v458 = vmul.f32 %v202, %v397
    %v459 = vmul.f32 %v203, %v407
    %v460 = vmul.f32 %v204, %v417
    %v461 = vmul.f32 %v205, %v427
    %v462 = vmul.f32 %v206, %v437
    %v463 = vmul.f32 %v207, %v447
    %v465 = vperm.slane %v107, 0
    %v467 = vmul.f32 %v448, %v465
    %v468 = vmul.f32 %v449, %v465
    %v469 = vmul.f32 %v450, %v465
    %v470 = vmul.f32 %v451, %v465
    %v471 = vmul.f32 %v452, %v465
    %v472 = vmul.f32 %v453, %v465
    %v473 = vmul.f32 %v454, %v465
    %v474 = vmul.f32 %v455, %v465
    %v475 = vmul.f32 %v456, %v465
    %v476 = vmul.f32 %v457, %v465
    %v477 = vmul.f32 %v458, %v465
    %v478 = vmul.f32 %v459, %v465
    %v479 = vmul.f32 %v460, %v465
    %v480 = vmul.f32 %v461, %v465
    %v481 = vmul.f32 %v462, %v465
    %v482 = vmul.f32 %v463, %v465
    %v484 = vperm.slane %v108, 0
    %v486 = vadd.f32 %v467, %v484
    %v487 = vadd.f32 %v468, %v484
    %v488 = vadd.f32 %v469, %v484
    %v489 = vadd.f32 %v470, %v484
    %v490 = vadd.f32 %v471, %v484
    %v491 = vadd.f32 %v472, %v484
    %v492 = vadd.f32 %v473, %v484
    %v493 = vadd.f32 %v474, %v484
    %v494 = vadd.f32 %v475, %v484
    %v495 = vadd.f32 %v476, %v484
    %v496 = vadd.f32 %v477, %v484
    %v497 = vadd.f32 %v478, %v484
    %v498 = vadd.f32 %v479, %v484
    %v499 = vadd.f32 %v480, %v484
    %v500 = vadd.f32 %v481, %v484
    %v501 = vadd.f32 %v482, %v484
    %v502 = vpack.c.bf16 %v487, %v486
    %v503 = vpack.c.bf16 %v489, %v488
    %v504 = vpack.c.bf16 %v491, %v490
    %v505 = vpack.c.bf16 %v493, %v492
    %v506 = vpack.c.bf16 %v495, %v494
    %v507 = vpack.c.bf16 %v497, %v496
    %v508 = vpack.c.bf16 %v499, %v498
    %v509 = vpack.c.bf16 %v501, %v500
    %v510 = vld [vmem:[#allocation7] sm:$0xf]
    %v511 = vld [vmem:[#allocation7 + $0x4] sm:$0xf]
    %v512 = vld [vmem:[#allocation7 + $0x8] sm:$0xf]
    %v513 = vld [vmem:[#allocation7 + $0xc] sm:$0xf]
    %v514 = vld [vmem:[#allocation7 + $0x10] sm:$0xf]
    %v515 = vld [vmem:[#allocation7 + $0x14] sm:$0xf]
    %v516 = vld [vmem:[#allocation7 + $0x18] sm:$0xf]
    %v517 = vld [vmem:[#allocation7 + $0x1c] sm:$0xf]
    %v518 = vld [vmem:[#allocation7 + $0x20] sm:$0xf]
    %v519 = vld [vmem:[#allocation7 + $0x24] sm:$0xf]
    %v520 = vld [vmem:[#allocation7 + $0x28] sm:$0xf]
    %v521 = vld [vmem:[#allocation7 + $0x2c] sm:$0xf]
    %v522 = vld [vmem:[#allocation7 + $0x30] sm:$0xf]
    %v523 = vld [vmem:[#allocation7 + $0x34] sm:$0xf]
    %v524 = vld [vmem:[#allocation7 + $0x38] sm:$0xf]
    %v525 = vld [vmem:[#allocation7 + $0x3c] sm:$0xf]
    %v526 = vld [vmem:[%s4] sm:$0x1]
    %v528 = vperm.slane %v526, 0
    %v546 = vunpack.c.l.b16 %v510
    %v547 = vunpack.c.l.b16 %v511
    %v548 = vunpack.c.l.b16 %v512
    %v549 = vunpack.c.l.b16 %v513
    %v550 = vunpack.c.l.b16 %v514
    %v551 = vunpack.c.l.b16 %v515
    %v552 = vunpack.c.l.b16 %v516
    %v553 = vunpack.c.l.b16 %v517
    %v554 = vunpack.c.l.b16 %v518
    %v555 = vunpack.c.l.b16 %v519
    %v556 = vunpack.c.l.b16 %v520
    %v557 = vunpack.c.l.b16 %v521
    %v558 = vunpack.c.l.b16 %v522
    %v559 = vunpack.c.l.b16 %v523
    %v560 = vunpack.c.l.b16 %v524
    %v561 = vunpack.c.l.b16 %v525
    %v562 = vpack.c.b16 %v547, %v546
    %v563 = vpack.c.b16 %v549, %v548
    %v564 = vpack.c.b16 %v551, %v550
    %v565 = vpack.c.b16 %v553, %v552
    %v566 = vpack.c.b16 %v555, %v554
    %v567 = vpack.c.b16 %v557, %v556
    %v568 = vpack.c.b16 %v559, %v558
    %v569 = vpack.c.b16 %v561, %v560
    %578 = vmatpush.bf16.msra.mxu0 %v569
    %579 = vmatpush.bf16.msra.mxu0 %v568
    %580 = vmatpush.bf16.msra.mxu0 %v567
    %581 = vmatpush.bf16.msra.mxu0 %v566
    %582 = vmatpush.bf16.msra.mxu0 %v565
    %583 = vmatpush.bf16.msra.mxu0 %v564
    %584 = vmatpush.bf16.msra.mxu0 %v563
    %585 = vmatpush.bf16.msra.mxu0 %v562
    %586 = vmatmul.bf16.gmra.mxu0 %v502
    %v587 = vpop.f32.mrf.mxu0
    %v588 = vadd.f32 %v528, %v587
    %v589 = vpop.f32.mrf.mxu0
    %v590 = vadd.f32 %v528, %v589
    %591 = vmatmul.bf16.gmra.mxu0 %v503
    %v592 = vpop.f32.mrf.mxu0
    %v593 = vadd.f32 %v528, %v592
    %v594 = vpop.f32.mrf.mxu0
    %v595 = vadd.f32 %v528, %v594
    %596 = vmatmul.bf16.gmra.mxu0 %v504
    %v597 = vpop.f32.mrf.mxu0
    %v598 = vadd.f32 %v528, %v597
    %v599 = vpop.f32.mrf.mxu0
    %v600 = vadd.f32 %v528, %v599
    %601 = vmatmul.bf16.gmra.mxu0 %v505
    %v602 = vpop.f32.mrf.mxu0
    %v603 = vadd.f32 %v528, %v602
    %v604 = vpop.f32.mrf.mxu0
    %v605 = vadd.f32 %v528, %v604
    %606 = vmatmul.bf16.gmra.mxu0 %v506
    %v607 = vpop.f32.mrf.mxu0
    %v608 = vadd.f32 %v528, %v607
    %v609 = vpop.f32.mrf.mxu0
    %v610 = vadd.f32 %v528, %v609
    %611 = vmatmul.bf16.gmra.mxu0 %v507
    %v612 = vpop.f32.mrf.mxu0
    %v613 = vadd.f32 %v528, %v612
    %v614 = vpop.f32.mrf.mxu0
    %v615 = vadd.f32 %v528, %v614
    %616 = vmatmul.bf16.gmra.mxu0 %v508
    %v617 = vpop.f32.mrf.mxu0
    %v618 = vadd.f32 %v528, %v617
    %v619 = vpop.f32.mrf.mxu0
    %v620 = vadd.f32 %v528, %v619
    %621 = vmatmul.bf16.gmra.mxu0 %v509
    %v622 = vpop.f32.mrf.mxu0
    %v623 = vadd.f32 %v528, %v622
    %v624 = vpop.f32.mrf.mxu0
    %v625 = vadd.f32 %v528, %v624
    %626 = vdwg.mxu0
    %v627 = vld [vmem:[#allocation8] sm:$0xf]
    %v628 = vld [vmem:[#allocation8 + $0x4] sm:$0xf]
    %v629 = vld [vmem:[#allocation8 + $0x8] sm:$0xf]
    %v630 = vld [vmem:[#allocation8 + $0xc] sm:$0xf]
    %v631 = vld [vmem:[#allocation8 + $0x10] sm:$0xf]
    %v632 = vld [vmem:[#allocation8 + $0x14] sm:$0xf]
    %v633 = vld [vmem:[#allocation8 + $0x18] sm:$0xf]
    %v634 = vld [vmem:[#allocation8 + $0x1c] sm:$0xf]
    %v635 = vld [vmem:[#allocation8 + $0x20] sm:$0xf]
    %v636 = vld [vmem:[#allocation8 + $0x24] sm:$0xf]
    %v637 = vld [vmem:[#allocation8 + $0x28] sm:$0xf]
    %v638 = vld [vmem:[#allocation8 + $0x2c] sm:$0xf]
    %v639 = vld [vmem:[#allocation8 + $0x30] sm:$0xf]
    %v640 = vld [vmem:[#allocation8 + $0x34] sm:$0xf]
    %v641 = vld [vmem:[#allocation8 + $0x38] sm:$0xf]
    %v642 = vld [vmem:[#allocation8 + $0x3c] sm:$0xf]
    %v643 = vld [vmem:[%s6] sm:$0x1]
    %v645 = vperm.slane %v643, 0
    %v663 = vunpack.c.l.b16 %v627
    %v664 = vunpack.c.l.b16 %v628
    %v665 = vunpack.c.l.b16 %v629
    %v666 = vunpack.c.l.b16 %v630
    %v667 = vunpack.c.l.b16 %v631
    %v668 = vunpack.c.l.b16 %v632
    %v669 = vunpack.c.l.b16 %v633
    %v670 = vunpack.c.l.b16 %v634
    %v671 = vunpack.c.l.b16 %v635
    %v672 = vunpack.c.l.b16 %v636
    %v673 = vunpack.c.l.b16 %v637
    %v674 = vunpack.c.l.b16 %v638
    %v675 = vunpack.c.l.b16 %v639
    %v676 = vunpack.c.l.b16 %v640
    %v677 = vunpack.c.l.b16 %v641
    %v678 = vunpack.c.l.b16 %v642
    %v679 = vpack.c.b16 %v664, %v663
    %v680 = vpack.c.b16 %v666, %v665
    %v681 = vpack.c.b16 %v668, %v667
    %v682 = vpack.c.b16 %v670, %v669
    %v683 = vpack.c.b16 %v672, %v671
    %v684 = vpack.c.b16 %v674, %v673
    %v685 = vpack.c.b16 %v676, %v675
    %v686 = vpack.c.b16 %v678, %v677
    %695 = vmatpush.bf16.msra.mxu0 %v686
    %696 = vmatpush.bf16.msra.mxu0 %v685
    %697 = vmatpush.bf16.msra.mxu0 %v684
    %698 = vmatpush.bf16.msra.mxu0 %v683
    %699 = vmatpush.bf16.msra.mxu0 %v682
    %700 = vmatpush.bf16.msra.mxu0 %v681
    %701 = vmatpush.bf16.msra.mxu0 %v680
    %702 = vmatpush.bf16.msra.mxu0 %v679
    %703 = vmatmul.bf16.gmra.mxu0 %v502
    %v704 = vpop.f32.mrf.mxu0
    %v705 = vadd.f32 %v645, %v704
    %v706 = vpop.f32.mrf.mxu0
    %v707 = vadd.f32 %v645, %v706
    %708 = vmatmul.bf16.gmra.mxu0 %v503
    %v709 = vpop.f32.mrf.mxu0
    %v710 = vadd.f32 %v645, %v709
    %v711 = vpop.f32.mrf.mxu0
    %v712 = vadd.f32 %v645, %v711
    %713 = vmatmul.bf16.gmra.mxu0 %v504
    %v714 = vpop.f32.mrf.mxu0
    %v715 = vadd.f32 %v645, %v714
    %v716 = vpop.f32.mrf.mxu0
    %v717 = vadd.f32 %v645, %v716
    %718 = vmatmul.bf16.gmra.mxu0 %v505
    %v719 = vpop.f32.mrf.mxu0
    %v720 = vadd.f32 %v645, %v719
    %v721 = vpop.f32.mrf.mxu0
    %v722 = vadd.f32 %v645, %v721
    %723 = vmatmul.bf16.gmra.mxu0 %v506
    %v724 = vpop.f32.mrf.mxu0
    %v725 = vadd.f32 %v645, %v724
    %v726 = vpop.f32.mrf.mxu0
    %v727 = vadd.f32 %v645, %v726
    %728 = vmatmul.bf16.gmra.mxu0 %v507
    %v729 = vpop.f32.mrf.mxu0
    %v730 = vadd.f32 %v645, %v729
    %v731 = vpop.f32.mrf.mxu0
    %v732 = vadd.f32 %v645, %v731
    %733 = vmatmul.bf16.gmra.mxu0 %v508
    %v734 = vpop.f32.mrf.mxu0
    %v735 = vadd.f32 %v645, %v734
    %v736 = vpop.f32.mrf.mxu0
    %v737 = vadd.f32 %v645, %v736
    %738 = vmatmul.bf16.gmra.mxu0 %v509
    %v739 = vpop.f32.mrf.mxu0
    %v740 = vadd.f32 %v645, %v739
    %v741 = vpop.f32.mrf.mxu0
    %v742 = vadd.f32 %v645, %v741
    %743 = vdwg.mxu0
    %744 = vxpose.xlu0.b32.start [1/16] %v588, 128
    %745 = vxpose.xlu0.b32.cont [2/16] %v590, 128
    %746 = vxpose.xlu0.b32.cont [3/16] %v593, 128
    %747 = vxpose.xlu0.b32.cont [4/16] %v595, 128
    %748 = vxpose.xlu0.b32.cont [5/16] %v598, 128
    %749 = vxpose.xlu0.b32.cont [6/16] %v600, 128
    %750 = vxpose.xlu0.b32.cont [7/16] %v603, 128
    %751 = vxpose.xlu0.b32.cont [8/16] %v605, 128
    %752 = vxpose.xlu0.b32.cont [9/16] %v608, 128
    %753 = vxpose.xlu0.b32.cont [10/16] %v610, 128
    %754 = vxpose.xlu0.b32.cont [11/16] %v613, 128
    %755 = vxpose.xlu0.b32.cont [12/16] %v615, 128
    %756 = vxpose.xlu0.b32.cont [13/16] %v618, 128
    %757 = vxpose.xlu0.b32.cont [14/16] %v620, 128
    %758 = vxpose.xlu0.b32.cont [15/16] %v623, 128
    %759 = vxpose.xlu0.b32.end [16/16] %v625, 128
    %v760 = vpop.trf.xlu0
    %v761 = vpop.trf.xlu0
    %v762 = vpop.trf.xlu0
    %v763 = vpop.trf.xlu0
    %v764 = vpop.trf.xlu0
    %v765 = vpop.trf.xlu0
    %v766 = vpop.trf.xlu0
    %v767 = vpop.trf.xlu0
    %v768 = vpop.trf.xlu0
    %v769 = vpop.trf.xlu0
    %v770 = vpop.trf.xlu0
    %v771 = vpop.trf.xlu0
    %v772 = vpop.trf.xlu0
    %v773 = vpop.trf.xlu0
    %v774 = vpop.trf.xlu0
    %v775 = vpop.trf.xlu0
    %v776 = vpack.c.bf16 %v760, %v760
    %v777 = vpack.c.bf16 %v761, %v761
    %v778 = vpack.c.bf16 %v762, %v762
    %v779 = vpack.c.bf16 %v763, %v763
    %v780 = vpack.c.bf16 %v764, %v764
    %v781 = vpack.c.bf16 %v765, %v765
    %v782 = vpack.c.bf16 %v766, %v766
    %v783 = vpack.c.bf16 %v767, %v767
    %v784 = vpack.c.bf16 %v768, %v768
    %v785 = vpack.c.bf16 %v769, %v769
    %v786 = vpack.c.bf16 %v770, %v770
    %v787 = vpack.c.bf16 %v771, %v771
    %v788 = vpack.c.bf16 %v772, %v772
    %v789 = vpack.c.bf16 %v773, %v773
    %v790 = vpack.c.bf16 %v774, %v774
    %v791 = vpack.c.bf16 %v775, %v775
    %792 = vst [vmem:[#allocation10] sm:$0xf] %v776
    %793 = vst [vmem:[#allocation10 + $0x4] sm:$0xf] %v777
    %794 = vst [vmem:[#allocation10 + $0x8] sm:$0xf] %v778
    %795 = vst [vmem:[#allocation10 + $0xc] sm:$0xf] %v779
    %796 = vst [vmem:[#allocation10 + $0x10] sm:$0xf] %v780
    %797 = vst [vmem:[#allocation10 + $0x14] sm:$0xf] %v781
    %798 = vst [vmem:[#allocation10 + $0x18] sm:$0xf] %v782
    %799 = vst [vmem:[#allocation10 + $0x1c] sm:$0xf] %v783
    %800 = vst [vmem:[#allocation10 + $0x20] sm:$0xf] %v784
    %801 = vst [vmem:[#allocation10 + $0x24] sm:$0xf] %v785
    %802 = vst [vmem:[#allocation10 + $0x28] sm:$0xf] %v786
    %803 = vst [vmem:[#allocation10 + $0x2c] sm:$0xf] %v787
    %804 = vst [vmem:[#allocation10 + $0x30] sm:$0xf] %v788
    %805 = vst [vmem:[#allocation10 + $0x34] sm:$0xf] %v789
    %806 = vst [vmem:[#allocation10 + $0x38] sm:$0xf] %v790
    %807 = vst [vmem:[#allocation10 + $0x3c] sm:$0xf] %v791
    %v808 = vpack.c.bf16 %v705, %v705
    %v809 = vpack.c.bf16 %v707, %v707
    %v810 = vpack.c.bf16 %v710, %v710
    %v811 = vpack.c.bf16 %v712, %v712
    %v812 = vpack.c.bf16 %v715, %v715
    %v813 = vpack.c.bf16 %v717, %v717
    %v814 = vpack.c.bf16 %v720, %v720
    %v815 = vpack.c.bf16 %v722, %v722
    %v816 = vpack.c.bf16 %v725, %v725
    %v817 = vpack.c.bf16 %v727, %v727
    %v818 = vpack.c.bf16 %v730, %v730
    %v819 = vpack.c.bf16 %v732, %v732
    %v820 = vpack.c.bf16 %v735, %v735
    %v821 = vpack.c.bf16 %v737, %v737
    %v822 = vpack.c.bf16 %v740, %v740
    %v823 = vpack.c.bf16 %v742, %v742
    %824 = vst [vmem:[#allocation11] sm:$0xf] %v808
    %825 = vst [vmem:[#allocation11 + $0x4] sm:$0xf] %v809
    %826 = vst [vmem:[#allocation11 + $0x8] sm:$0xf] %v810
    %827 = vst [vmem:[#allocation11 + $0xc] sm:$0xf] %v811
    %828 = vst [vmem:[#allocation11 + $0x10] sm:$0xf] %v812
    %829 = vst [vmem:[#allocation11 + $0x14] sm:$0xf] %v813
    %830 = vst [vmem:[#allocation11 + $0x18] sm:$0xf] %v814
    %831 = vst [vmem:[#allocation11 + $0x1c] sm:$0xf] %v815
    %832 = vst [vmem:[#allocation11 + $0x20] sm:$0xf] %v816
    %833 = vst [vmem:[#allocation11 + $0x24] sm:$0xf] %v817
    %834 = vst [vmem:[#allocation11 + $0x28] sm:$0xf] %v818
    %835 = vst [vmem:[#allocation11 + $0x2c] sm:$0xf] %v819
    %836 = vst [vmem:[#allocation11 + $0x30] sm:$0xf] %v820
    %837 = vst [vmem:[#allocation11 + $0x34] sm:$0xf] %v821
    %838 = vst [vmem:[#allocation11 + $0x38] sm:$0xf] %v822
    %839 = vst [vmem:[#allocation11 + $0x3c] sm:$0xf] %v823
    // Predicated region
    $region46: #{tpu_custom_call.1} parent=1 // pred_check
      _
    $region47: #{tpu_custom_call.1} parent=1 // pred_check_branch
      %841 = sbr.rel (0) target = $region49
    $region48: #{tpu_custom_call.1} parent=1 // pred_region
      %843 = vsyncadd [#allocation4], 0
      %s844 = sshll.u32 [#allocation10], 4
      %s845 = int_to_ptr.vmem [resolvable:$true] %s844
      %s846 = sshll.u32 %s7, 4
      %s847 = int_to_ptr.hbm [resolvable:$true] %s846
      %852 = dma.vmem_to_hbm [thread:$0]  %s845, 1024, %s847, [#allocation4], 64, 64, 4
    $region49: #{tpu_custom_call.1} parent=1 // pred_fallthru
      _
    // Predicated region
    $region50: #{tpu_custom_call.1} parent=1 // pred_check
      _
    $region51: #{tpu_custom_call.1} parent=1 // pred_check_branch
      %854 = sbr.rel (0) target = $region53
    $region52: #{tpu_custom_call.1} parent=1 // pred_region
      %856 = vsyncadd [#allocation12], 0
      %s857 = sshll.u32 [#allocation11], 4
      %s858 = int_to_ptr.vmem [resolvable:$true] %s857
      %s859 = sshll.u32 %s8, 4
      %s860 = int_to_ptr.hbm [resolvable:$true] %s859
      %865 = dma.vmem_to_hbm [thread:$0]  %s858, 1024, %s860, [#allocation12], 64, 64, 4
    $region53: #{tpu_custom_call.1} parent=1 // pred_fallthru
      _
    // Predicated region
    $region54: #{tpu_custom_call.1} parent=1 // pred_check
      _
    $region55: #{tpu_custom_call.1} parent=1 // pred_check_branch
      %867 = sbr.rel (0) target = $region57
    $region56: #{tpu_custom_call.1} parent=1 // pred_region
      %869 = dma.done [#allocation4], 1024
    $region57: #{tpu_custom_call.1} parent=1 // pred_fallthru
      _
    // Predicated region
    $region58: #{tpu_custom_call.1} parent=1 // pred_check
      _
    $region59: #{tpu_custom_call.1} parent=1 // pred_check_branch
      %871 = sbr.rel (0) target = $region61
    $region60: #{tpu_custom_call.1} parent=1 // pred_region
      %873 = dma.done [#allocation12], 1024
    $region61: #{tpu_custom_call.1} parent=1 // pred_fallthru
      _
    %874 = vsyncpa [#allocation3], 1
    %875 = vsyncpa [#allocation6], 1
    %876 = vsyncpa [#allocation9], 1
    %877 = vsyncpa [#allocation4], 1
    %878 = vsyncpa [#allocation12], 1

</llo_original>
